<compile_context>
chip_gen: v5e
topology: v5e:2x2
jax: 0.10.0
libtpu: 0.0.40
codegen_flags: <defaults>
</compile_context>

<pallas_src>
import jax
import jax.numpy as jnp
from jax.experimental import pallas as pl
from jax.experimental.pallas import tpu as pltpu


def _round_up(v, m):
    return (v + m - 1) // m * m


def _vmem_caps():
    """(tiling budget, scoped-limit cap) derived from this chip's physical VMEM."""
    try:
        phys = int(pltpu.get_tpu_info().vmem_capacity_bytes)
    except Exception:
        phys = 64 * (1 << 20)       # conservative fallback: v7x (64 MiB / TC)
    budget = (phys * 3) // 4        # ~96 MiB on v5e/v6e, ~48 MiB on v7x
    cap = (phys * 17) // 20         # never hand the compiler the full VMEM
    return budget, cap


# --------------------------------------------------------------------------- #
# Kernels
# --------------------------------------------------------------------------- #
def _mlp_kernel_resident(x_ref, w1_ref, b1_ref, w2_ref, b2_ref, o_ref):
    # x: (tile_b, indim), w1: (indim, hidden_p), b1: (1, hidden_p)
    # w2: (hidden_p, outdim), b2: (1, outdim), o: (tile_b, outdim)
    h = jnp.dot(x_ref[...], w1_ref[...], preferred_element_type=jnp.float32)
    h = jnp.maximum(h + b1_ref[...], 0.0)                       # bias + ReLU (VPU, f32)
    y = jnp.dot(h.astype(w2_ref.dtype), w2_ref[...],
                preferred_element_type=jnp.float32)
    o_ref[...] = (y + b2_ref[...]).astype(o_ref.dtype)


def _mlp_kernel_htiled(x_ref, w1_ref, b1_ref, w2_ref, b2_ref, o_ref, acc_ref):
    # Fallback: hidden dimension tiled; second matmul accumulated over it.
    # x: (tile_b, indim), w1: (indim, tile_h), b1: (1, tile_h)
    # w2: (tile_h, outdim), b2: (1, outdim), o/acc: (tile_b, outdim)
    j = pl.program_id(1)

    @pl.when(j == 0)
    def _():
        acc_ref[...] = jnp.zeros_like(acc_ref)

    h = jnp.dot(x_ref[...], w1_ref[...], preferred_element_type=jnp.float32)
    h = jnp.maximum(h + b1_ref[...], 0.0)
    acc_ref[...] += jnp.dot(h.astype(w2_ref.dtype), w2_ref[...],
                            preferred_element_type=jnp.float32)
    # Output block is resident across the reduction axis; the last store wins.
    o_ref[...] = (acc_ref[...] + b2_ref[...]).astype(o_ref.dtype)


# --------------------------------------------------------------------------- #
# Wrapper
# --------------------------------------------------------------------------- #
def mlp_forward(x, w1, b1, w2, b2, *, tile_b=None, tile_h=None):
    """x: (B, indim); w1: (indim, hidden); b1: (hidden,);
       w2: (hidden, outdim); b2: (outdim,).  Returns (B, outdim)."""
    B, indim = x.shape
    hidden = w1.shape[1]
    outdim = w2.shape[1]
    itemsize = jnp.dtype(x.dtype).itemsize
    w_item = jnp.dtype(w1.dtype).itemsize
    # Sublane packing: 8 for f32, 16 for bf16, 32 for 8-bit (perf rounding only).
    pack = max(8, 32 // itemsize)
    budget, vmem_cap = _vmem_caps()

    # ---- choose path: weights VMEM-resident vs. hidden-tiled fallback -------
    hidden_128 = _round_up(hidden, 128)
    # Pipelined inputs are double-buffered even with a constant index_map.
    resident2 = 2 * ((indim * hidden_128 + hidden_128 * outdim) * w_item
                     + (hidden_128 + outdim) * w_item)
    use_htiled = (tile_h is not None) or (resident2 > (45 * budget) // 100)

    def _auto_tile_b(avail, per_row):
        tb = min(max(avail, per_row * pack) // per_row, 1024)
        # Keep >=2 (>=4 for big B) grid steps so DMAs pipeline and v7x can
        # shard the batch axis across both TensorCores.
        min_steps = 4 if B >= 1024 else (2 if B >= 128 else 1)
        if min_steps > 1:
            tb = min(tb, _round_up(pl.cdiv(B, min_steps), pack))
        tb = min(tb, _round_up(B, pack))
        return max(pack, (tb // pack) * pack)

    if not use_htiled:
        # ------------------------- resident-weights path ---------------------
        hidden_p = hidden_128
        # Streamed per-batch-row bytes: double-buffered x + out tiles plus f32
        # intermediates (h and the second-matmul result).
        per_row = (2 * indim * itemsize + 2 * outdim * itemsize
                   + (hidden_p + outdim) * 4)
        if tile_b is None:
            tile_b = _auto_tile_b(budget - resident2, per_row)
        elif tile_b < B:
            tile_b = max(8, _round_up(tile_b, 8))
        if tile_b >= B:
            tile_b = B                      # single full-extent block is legal

        grid = (pl.cdiv(B, tile_b),)

        # Lane-pad only the hidden dim (zero pad is numerically inert).
        w1_p = w1 if hidden_p == hidden else jnp.pad(w1, ((0, 0), (0, hidden_p - hidden)))
        b1_p = (b1 if hidden_p == hidden else jnp.pad(b1, (0, hidden_p - hidden))
                ).reshape(1, hidden_p)
        w2_p = w2 if hidden_p == hidden else jnp.pad(w2, ((0, hidden_p - hidden), (0, 0)))
        b2_p = b2.reshape(1, outdim)

        est = resident2 + tile_b * per_row
        vmem_limit = min(max(est + est // 4 + (2 << 20), 16 << 20), vmem_cap)

        flops = 2 * B * (indim * hidden_p + hidden_p * outdim)
        bytes_accessed = ((B * (indim + outdim)) * itemsize
                          + (indim * hidden_p + hidden_p * outdim
                             + hidden_p + outdim) * w_item)

        return pl.pallas_call(
            _mlp_kernel_resident,
            out_shape=jax.ShapeDtypeStruct((B, outdim), x.dtype),
            grid_spec=pltpu.PrefetchScalarGridSpec(
                num_scalar_prefetch=0,
                grid=grid,
                in_specs=[
                    pl.BlockSpec((tile_b, indim), lambda i: (i, 0)),       # x: streamed
                    pl.BlockSpec((indim, hidden_p), lambda i: (0, 0)),     # w1: resident
                    pl.BlockSpec((1, hidden_p), lambda i: (0, 0)),         # b1: resident
                    pl.BlockSpec((hidden_p, outdim), lambda i: (0, 0)),    # w2: resident
                    pl.BlockSpec((1, outdim), lambda i: (0, 0)),           # b2: resident
                ],
                out_specs=pl.BlockSpec((tile_b, outdim), lambda i: (i, 0)),
            ),
            compiler_params=pltpu.CompilerParams(
                dimension_semantics=("parallel",),
                vmem_limit_bytes=int(vmem_limit),
            ),
            cost_estimate=pl.CostEstimate(flops=int(flops), transcendentals=0,
                                          bytes_accessed=int(bytes_accessed)),
        )(x, w1_p, b1_p, w2_p, b2_p)

    # ----------------------------- hidden-tiled path -------------------------
    # TODO(synk): indim (K of the first matmul) is not tiled in this fallback;
    # extremely large indim would additionally require a K-tiled first matmul.
    if tile_h is None:
        tile_h = 512
        while tile_h > 128 and 2 * (indim * tile_h + tile_h * outdim + tile_h) * w_item > budget // 2:
            tile_h //= 2
    tile_h = max(128, _round_up(tile_h, 128))
    tile_h = min(tile_h, hidden_128)
    hidden_p = _round_up(hidden, tile_h)    # exact multiple -> no OOB weight reads

    # Double-buffered streamed weight tiles + b2, per grid step.
    stream_w = (2 * (indim * tile_h + tile_h * outdim + tile_h) * w_item
                + 2 * outdim * w_item)
    per_row = (2 * indim * itemsize + 2 * outdim * itemsize
               + outdim * 4 + tile_h * 4)
    if tile_b is None:
        tile_b = _auto_tile_b(budget - stream_w, per_row)
    elif tile_b < B:
        tile_b = max(8, _round_up(tile_b, 8))
    if tile_b >= B:
        tile_b = B

    grid = (pl.cdiv(B, tile_b), hidden_p // tile_h)

    w1_p = w1 if hidden_p == hidden else jnp.pad(w1, ((0, 0), (0, hidden_p - hidden)))
    b1_p = (b1 if hidden_p == hidden else jnp.pad(b1, (0, hidden_p - hidden))
            ).reshape(1, hidden_p)
    w2_p = w2 if hidden_p == hidden else jnp.pad(w2, ((0, hidden_p - hidden), (0, 0)))
    b2_p = b2.reshape(1, outdim)

    est = stream_w + tile_b * per_row
    vmem_limit = min(max(est + est // 4 + (2 << 20), 16 << 20), vmem_cap)

    num_b_tiles = grid[0]
    flops = 2 * B * (indim * hidden_p + hidden_p * outdim)
    bytes_accessed = ((B * (indim + outdim)) * itemsize
                      + num_b_tiles * (indim * hidden_p + hidden_p * outdim
                                       + hidden_p + outdim) * w_item)

    return pl.pallas_call(
        _mlp_kernel_htiled,
        out_shape=jax.ShapeDtypeStruct((B, outdim), x.dtype),
        grid_spec=pltpu.PrefetchScalarGridSpec(
            num_scalar_prefetch=0,
            grid=grid,
            in_specs=[
                pl.BlockSpec((tile_b, indim), lambda i, j: (i, 0)),    # x
                pl.BlockSpec((indim, tile_h), lambda i, j: (0, j)),    # w1 tile
                pl.BlockSpec((1, tile_h), lambda i, j: (0, j)),        # b1 tile
                pl.BlockSpec((tile_h, outdim), lambda i, j: (j, 0)),   # w2 tile
                pl.BlockSpec((1, outdim), lambda i, j: (0, 0)),        # b2
            ],
            out_specs=pl.BlockSpec((tile_b, outdim), lambda i, j: (i, 0)),
            scratch_shapes=[pltpu.VMEM((tile_b, outdim), jnp.float32)],
        ),
        compiler_params=pltpu.CompilerParams(
            dimension_semantics=("parallel", "arbitrary"),
            vmem_limit_bytes=int(vmem_limit),
        ),
        cost_estimate=pl.CostEstimate(flops=int(flops), transcendentals=0,
                                      bytes_accessed=int(bytes_accessed)),
    )(x, w1_p, b1_p, w2_p, b2_p)


def reference_forward(x, w1, b1, w2, b2):
    h = jnp.maximum(x @ w1 + b1, 0.0)
    return h @ w2 + b2


if __name__ == "__main__":
    key = jax.random.PRNGKey(0)

    def make_inputs(k, batch, indim, outdim):
        hidden = indim // 2
        kx, k1, k2, k3, k4 = jax.random.split(k, 5)
        x = jax.random.normal(kx, (batch, indim), dtype=jnp.float32)
        # torch.nn.Linear stores (out_features, in_features); transpose for x @ W.
        w1 = (jax.random.normal(k1, (hidden, indim), dtype=jnp.float32) * 0.05).T
        b1 = jax.random.normal(k2, (hidden,), dtype=jnp.float32) * 0.05
        w2 = (jax.random.normal(k3, (outdim, hidden), dtype=jnp.float32) * 0.05).T
        b2 = jax.random.normal(k4, (outdim,), dtype=jnp.float32) * 0.05
        return x, w1, b1, w2, b2

    k0, k1 = jax.random.split(key)

    # 1) Small config, auto-tiled resident-weights path.
    args = make_inputs(k0, batch=8, indim=64, outdim=10)
    out = jax.block_until_ready(mlp_forward(*args))
    assert out.shape == (8, 10)
    assert jnp.allclose(out, reference_forward(*args), atol=1e-4, rtol=1e-4)

    # 2) Batch not a multiple of the tile: exercises partial-last-block handling
    #    (no wrapper-side batch pad copy).
    args2 = make_inputs(k1, batch=24, indim=512, outdim=10)
    out2 = jax.block_until_ready(mlp_forward(*args2, tile_b=16))
    assert out2.shape == (24, 10)
    assert jnp.allclose(out2, reference_forward(*args2), atol=1e-3, rtol=1e-3)

    # 3) Forced hidden-tiled fallback path (multi-step reduction axis + scratch acc).
    out3 = jax.block_until_ready(mlp_forward(*args2, tile_b=16, tile_h=128))
    assert out3.shape == (24, 10)
    assert jnp.allclose(out3, reference_forward(*args2), atol=1e-3, rtol=1e-3)

    print("KERNEL_OK")
</pallas_src>

<mosaic_0001>
module attributes {stable_mosaic.version = 11 : i64} {
  func.func @_mlp_kernel_resident(%arg0: i32, %arg1: memref<8x64xf32, #tpu.memory_space<vmem>>, %arg2: memref<64x128xf32, #tpu.memory_space<vmem>>, %arg3: memref<1x128xf32, #tpu.memory_space<vmem>>, %arg4: memref<128x10xf32, #tpu.memory_space<vmem>>, %arg5: memref<1x10xf32, #tpu.memory_space<vmem>>, %arg6: memref<8x10xf32, #tpu.memory_space<vmem>>) attributes {dimension_semantics = [#tpu.dimension_semantics<parallel>], iteration_bounds = array<i64: 1>, scalar_prefetch = 0 : i64, scratch_operands = 0 : i64, tpu.core_type = #tpu.core_type<tc>, window_params = [{transform_indices = @transform_0, window_bounds = array<i64: 8, 64>}, {pipeline_mode = #tpu.pipeline_mode<synchronous>, transform_indices = @transform_1, window_bounds = array<i64: 64, 128>}, {pipeline_mode = #tpu.pipeline_mode<synchronous>, transform_indices = @transform_2, window_bounds = array<i64: 1, 128>}, {pipeline_mode = #tpu.pipeline_mode<synchronous>, transform_indices = @transform_3, window_bounds = array<i64: 128, 10>}, {pipeline_mode = #tpu.pipeline_mode<synchronous>, transform_indices = @transform_4, window_bounds = array<i64: 1, 10>}, {transform_indices = @transform_5, window_bounds = array<i64: 8, 10>}]} {
    %c0 = arith.constant 0 : index
    %c0_0 = arith.constant 0 : index
    %0 = vector.load %arg1[%c0, %c0_0] : memref<8x64xf32, #tpu.memory_space<vmem>>, vector<8x64xf32>
    %c0_1 = arith.constant 0 : index
    %c0_2 = arith.constant 0 : index
    %1 = vector.load %arg2[%c0_1, %c0_2] : memref<64x128xf32, #tpu.memory_space<vmem>>, vector<64x128xf32>
    %cst = arith.constant dense<0.000000e+00> : vector<8x128xf32>
    %2 = tpu.matmul %0, %1, %cst {dimension_numbers = #tpu.dot_dimension_numbers<[1], [0], [0], [1], [0, 0, 1, 1], [], []>} : vector<8x64xf32>, vector<64x128xf32>, vector<8x128xf32> -> vector<8x128xf32>
    %c0_3 = arith.constant 0 : index
    %c0_4 = arith.constant 0 : index
    %3 = vector.load %arg3[%c0_3, %c0_4] : memref<1x128xf32, #tpu.memory_space<vmem>>, vector<1x128xf32>
    %4 = vector.broadcast %3 : vector<1x128xf32> to vector<8x128xf32>
    %5 = arith.addf %2, %4 : vector<8x128xf32>
    %cst_5 = arith.constant 0.000000e+00 : f32
    %6 = vector.broadcast %cst_5 : f32 to vector<8x128xf32>
    %7 = arith.maximumf %5, %6 : vector<8x128xf32>
    %c0_6 = arith.constant 0 : index
    %c0_7 = arith.constant 0 : index
    %8 = vector.load %arg4[%c0_6, %c0_7] : memref<128x10xf32, #tpu.memory_space<vmem>>, vector<128x10xf32>
    %cst_8 = arith.constant dense<0.000000e+00> : vector<8x10xf32>
    %9 = tpu.matmul %7, %8, %cst_8 {dimension_numbers = #tpu.dot_dimension_numbers<[1], [0], [0], [1], [0, 0, 1, 1], [], []>} : vector<8x128xf32>, vector<128x10xf32>, vector<8x10xf32> -> vector<8x10xf32>
    %c0_9 = arith.constant 0 : index
    %c0_10 = arith.constant 0 : index
    %10 = vector.load %arg5[%c0_9, %c0_10] : memref<1x10xf32, #tpu.memory_space<vmem>>, vector<1x10xf32>
    %11 = vector.broadcast %10 : vector<1x10xf32> to vector<8x10xf32>
    %12 = arith.addf %9, %11 : vector<8x10xf32>
    %c0_11 = arith.constant 0 : index
    %c0_12 = arith.constant 0 : index
    %13 = vector.load %arg6[%c0_11, %c0_12] : memref<8x10xf32, #tpu.memory_space<vmem>>, vector<8x10xf32>
    tpu.vector_store %arg6[%c0_11, %c0_12], %12 {strides = array<i32>} : memref<8x10xf32, #tpu.memory_space<vmem>>, vector<8x10xf32>,
    return
  }
  func.func @transform_0(%arg0: i32) -> (i32, i32) {
    %c0_i32 = arith.constant 0 : i32
    %c0_i32_0 = arith.constant 0 : i32
    return %arg0, %c0_i32 : i32, i32
  }
  func.func @transform_1(%arg0: i32) -> (i32, i32) {
    %c0_i32 = arith.constant 0 : i32
    %c0_i32_0 = arith.constant 0 : i32
    %c0_i32_1 = arith.constant 0 : i32
    return %c0_i32, %c0_i32_0 : i32, i32
  }
  func.func @transform_2(%arg0: i32) -> (i32, i32) {
    %c0_i32 = arith.constant 0 : i32
    %c0_i32_0 = arith.constant 0 : i32
    %c0_i32_1 = arith.constant 0 : i32
    return %c0_i32, %c0_i32_0 : i32, i32
  }
  func.func @transform_3(%arg0: i32) -> (i32, i32) {
    %c0_i32 = arith.constant 0 : i32
    %c0_i32_0 = arith.constant 0 : i32
    %c0_i32_1 = arith.constant 0 : i32
    return %c0_i32, %c0_i32_0 : i32, i32
  }
  func.func @transform_4(%arg0: i32) -> (i32, i32) {
    %c0_i32 = arith.constant 0 : i32
    %c0_i32_0 = arith.constant 0 : i32
    %c0_i32_1 = arith.constant 0 : i32
    return %c0_i32, %c0_i32_0 : i32, i32
  }
  func.func @transform_5(%arg0: i32) -> (i32, i32) {
    %c0_i32 = arith.constant 0 : i32
    %c0_i32_0 = arith.constant 0 : i32
    return %arg0, %c0_i32 : i32, i32
  }
}

</mosaic_0001>

<llo_original>
// kernel: tpu_custom_call.1
$region0: #{tpu_custom_call.1}
  #allocation0 [shape = 'u32[]', space=smem, size = 0x4, offset = 0x4, fixed_abs, tag = 'smem constant byte address 0x4 - core index']
  #allocation1 [shape = 'u32[72,128]{1,0:T(1,128)}', space=vmem, size = 0x9000, scoped, tag = 'internal scratch']
  %s0 = inlined_call_operand.vmem [shape: f32[8,64], index: 0, kind: input, shape index: {}]
  %s1 = inlined_call_operand.vmem [shape: f32[64,128], index: 1, kind: input, shape index: {}]
  %s2 = inlined_call_operand.vmem [shape: f32[1,128], index: 2, kind: input, shape index: {}]
  %s3 = inlined_call_operand.vmem [shape: f32[128,10], index: 3, kind: input, shape index: {}]
  %s4 = inlined_call_operand.vmem [shape: f32[1,10], index: 4, kind: input, shape index: {}]
  %s5 = inlined_call_operand.hbm [shape: f32[8,10], index: 5, kind: output, shape index: {}]
  %s6 = sld [smem:[#allocation0]]
  $region30: #{tpu_custom_call.1} parent=0
    _
  %s8 = ssub.s32 1, %s6
  %s9 = scalar_select 0, %s8, %s6
  $region1: #{tpu_custom_call.1} parent=0
    #allocation2 [shape = 'u8[4096]{0}', space=vmem, size = 0x1000, scoped, tag = 'output window, operand 0, single buffered']
    #allocation3 [shape = 's32[1]{0}', space=sflag, size = 0x4, scoped, tag = 'scoped memory for tpu_custom_call.1']
    %10 = vsyncpa [#allocation3], 0
    // Predicated region
    $region2: #{tpu_custom_call.1} parent=1 // pred_check
      _
    $region3: #{tpu_custom_call.1} parent=1 // pred_check_branch
      %12 = sbr.rel (0) target = $region5
    $region4: #{tpu_custom_call.1} parent=1 // pred_region
      _
    $region5: #{tpu_custom_call.1} parent=1 // pred_fallthru
      _
    // Predicated region
    $region6: #{tpu_custom_call.1} parent=1 // pred_check
      _
    $region7: #{tpu_custom_call.1} parent=1 // pred_check_branch
      %14 = sbr.rel (0) target = $region9
    $region8: #{tpu_custom_call.1} parent=1 // pred_region
      _
    $region9: #{tpu_custom_call.1} parent=1 // pred_fallthru
      _
    // Predicated region
    $region10: #{tpu_custom_call.1} parent=1 // pred_check
      _
    $region11: #{tpu_custom_call.1} parent=1 // pred_check_branch
      %16 = sbr.rel (0) target = $region13
    $region12: #{tpu_custom_call.1} parent=1 // pred_region
      _
    $region13: #{tpu_custom_call.1} parent=1 // pred_fallthru
      _
    // Predicated region
    $region14: #{tpu_custom_call.1} parent=1 // pred_check
      _
    $region15: #{tpu_custom_call.1} parent=1 // pred_check_branch
      %18 = sbr.rel (0) target = $region17
    $region16: #{tpu_custom_call.1} parent=1 // pred_region
      _
    $region17: #{tpu_custom_call.1} parent=1 // pred_fallthru
      _
    // Predicated region
    $region18: #{tpu_custom_call.1} parent=1 // pred_check
      _
    $region19: #{tpu_custom_call.1} parent=1 // pred_check_branch
      %20 = sbr.rel (0) target = $region21
    $region20: #{tpu_custom_call.1} parent=1 // pred_region
      _
    $region21: #{tpu_custom_call.1} parent=1 // pred_fallthru
      _
    %v21 = vld [vmem:[%s0] sm:$0xff]
    %v22 = vld [vmem:[%s1] sm:$0xff]
    %v23 = vld [vmem:[%s1 + $0x8] sm:$0xff]
    %v24 = vld [vmem:[%s1 + $0x10] sm:$0xff]
    %v25 = vld [vmem:[%s1 + $0x18] sm:$0xff]
    %v26 = vld [vmem:[%s1 + $0x20] sm:$0xff]
    %v27 = vld [vmem:[%s1 + $0x28] sm:$0xff]
    %v28 = vld [vmem:[%s1 + $0x30] sm:$0xff]
    %v29 = vld [vmem:[%s1 + $0x38] sm:$0xff]
    %v30 = vld [vmem:[%s2] sm:$0x1]
    %v32 = vperm.slane %v30, 0
    %vm34 = vcmask 523264
    %v36 = vsel %vm34, %v21, 0
    %38 = vmatpush.msra.mxu0 0.0
    %39 = vmatpush.msra.mxu0 0.0
    %40 = vmatpush.msra.mxu0 0.0
    %41 = vmatpush.msra.mxu0 0.0
    %42 = vmatpush.msra.mxu0 0.0
    %43 = vmatpush.msra.mxu0 0.0
    %44 = vmatpush.msra.mxu0 0.0
    %45 = vmatpush.msra.mxu0 0.0
    %46 = vmatpush.msra.mxu0 %v29
    %47 = vmatpush.msra.mxu0 %v28
    %48 = vmatpush.msra.mxu0 %v27
    %49 = vmatpush.msra.mxu0 %v26
    %50 = vmatpush.msra.mxu0 %v25
    %51 = vmatpush.msra.mxu0 %v24
    %52 = vmatpush.msra.mxu0 %v23
    %53 = vmatpush.msra.mxu0 %v22
    %54 = vmatmul.f32.gmra.mxu0 %v36
    %v55 = vpop.f32.mrf.mxu0
    %v56 = vadd.f32 %v32, %v55
    %57 = vdwg.mxu0
    %v58 = vmax.f32 %v56, 0.0
    %v59 = vld [vmem:[%s3] sm:$0xff]
    %v60 = vld [vmem:[%s3 + $0x8] sm:$0xff]
    %v61 = vld [vmem:[%s3 + $0x10] sm:$0xff]
    %v62 = vld [vmem:[%s3 + $0x18] sm:$0xff]
    %v63 = vld [vmem:[%s3 + $0x20] sm:$0xff]
    %v64 = vld [vmem:[%s3 + $0x28] sm:$0xff]
    %v65 = vld [vmem:[%s3 + $0x30] sm:$0xff]
    %v66 = vld [vmem:[%s3 + $0x38] sm:$0xff]
    %v67 = vld [vmem:[%s3 + $0x40] sm:$0xff]
    %v68 = vld [vmem:[%s3 + $0x48] sm:$0xff]
    %v69 = vld [vmem:[%s3 + $0x50] sm:$0xff]
    %v70 = vld [vmem:[%s3 + $0x58] sm:$0xff]
    %v71 = vld [vmem:[%s3 + $0x60] sm:$0xff]
    %v72 = vld [vmem:[%s3 + $0x68] sm:$0xff]
    %v73 = vld [vmem:[%s3 + $0x70] sm:$0xff]
    %v74 = vld [vmem:[%s3 + $0x78] sm:$0xff]
    %v75 = vld [vmem:[%s4] sm:$0x1]
    %v77 = vperm.slane %v75, 0
    %79 = vmatpush.msra.mxu0 %v74
    %80 = vmatpush.msra.mxu0 %v73
    %81 = vmatpush.msra.mxu0 %v72
    %82 = vmatpush.msra.mxu0 %v71
    %83 = vmatpush.msra.mxu0 %v70
    %84 = vmatpush.msra.mxu0 %v69
    %85 = vmatpush.msra.mxu0 %v68
    %86 = vmatpush.msra.mxu0 %v67
    %87 = vmatpush.msra.mxu0 %v66
    %88 = vmatpush.msra.mxu0 %v65
    %89 = vmatpush.msra.mxu0 %v64
    %90 = vmatpush.msra.mxu0 %v63
    %91 = vmatpush.msra.mxu0 %v62
    %92 = vmatpush.msra.mxu0 %v61
    %93 = vmatpush.msra.mxu0 %v60
    %94 = vmatpush.msra.mxu0 %v59
    %95 = vmatmul.f32.gmra.mxu0 %v58
    %v96 = vpop.f32.mrf.mxu0
    %v97 = vadd.f32 %v77, %v96
    %98 = vdwg.mxu0
    %vm99 = vcmask 80896
    %100 = vst.msk [vmem:[#allocation2] sm:$0xff] %vm99, %v97
    // Predicated region
    $region22: #{tpu_custom_call.1} parent=1 // pred_check
      _
    $region23: #{tpu_custom_call.1} parent=1 // pred_check_branch
      %102 = sbr.rel (0) target = $region25
    $region24: #{tpu_custom_call.1} parent=1 // pred_region
      %104 = vsyncadd [#allocation3], 0
      %s106 = sshll.u32 [#allocation2], 4
      %s107 = int_to_ptr.vmem [resolvable:$true] %s106
      %s108 = sshll.u32 %s5, 4
      %s109 = int_to_ptr.hbm [resolvable:$true] %s108
      %111 = dma.vmem_to_hbm [thread:$0]  %s107, 128, %s109, [#allocation3]
    $region25: #{tpu_custom_call.1} parent=1 // pred_fallthru
      _
    // Predicated region
    $region26: #{tpu_custom_call.1} parent=1 // pred_check
      _
    $region27: #{tpu_custom_call.1} parent=1 // pred_check_branch
      %113 = sbr.rel (0) target = $region29
    $region28: #{tpu_custom_call.1} parent=1 // pred_region
      %115 = dma.done [#allocation3], 128
    $region29: #{tpu_custom_call.1} parent=1 // pred_fallthru
      _
    %116 = vsyncpa [#allocation3], 1

</llo_original>
